<compile_context>
chip_gen: v7x
topology: tpu7x:2x2x1
jax: 0.10.0
libtpu: 0.0.40
codegen_flags: <defaults>
</compile_context>

<pallas_src>
import functools
import math

import jax
import jax.numpy as jnp
import numpy as np
from jax.experimental import pallas as pl
from jax.experimental.pallas import tpu as pltpu


def _pe_kernel(params_ref, o_ref, *, tile_s: int):
    """Writes rows [i*tile_s, (i+1)*tile_s) of the sinusoidal table."""
    i = pl.program_id(0)
    S, D = o_ref.shape                       # S == tile_s
    params = params_ref[...]                 # (2, D), invariant across grid
    inv_freq = params[0:1, :]                # (1, D): frequency, repeated per pair
    odd = params[1:2, :]                     # (1, D): 1.0 on odd columns
    # (S, 1) absolute-position column; broadcast across lanes by the multiply.
    pos = (jax.lax.broadcasted_iota(jnp.int32, (S, 1), 0)
           + i * tile_s).astype(jnp.float32)
    angle = pos * inv_freq                   # (S, D)
    s = jnp.sin(angle)
    c = jnp.cos(angle)
    o_ref[...] = jnp.where(odd > 0.5, c, s)  # even cols -> sin, odd cols -> cos


def _round_up(x: int, m: int) -> int:
    return ((x + m - 1) // m) * m


def _per_buffer_budget_bytes() -> int:
    """Generation-aware output-tile byte budget.

    Effective live VMEM is ~6x this (2x double-buffered output + ~3x sin/cos
    temporaries + margin), so budgets are derived per-chip:
      v5e : 16 MiB default scoped VMEM  -> 2 MiB tile (~14 MiB live)
      v6e : 128 MiB physical            -> 8 MiB tile (~50 MiB live)
      v7x : 64 MiB physical / 32 scoped -> 6 MiB tile (~40 MiB live)
    """
    mib = 1024 * 1024
    try:
        kind = jax.devices()[0].device_kind.lower()
    except Exception:
        kind = ""
    if "v5 lite" in kind or "v5lite" in kind or "v5e" in kind:
        return 2 * mib
    if "v7" in kind:
        return 6 * mib
    if "v6" in kind:
        return 8 * mib
    return 4 * mib  # unknown chip: conservative


def _choose_tile_s(seq_len: int, d_model: int, budget_bytes: int) -> int:
    bytes_per_row = max(d_model, 1) * 4
    max_rows = max(8, ((budget_bytes // bytes_per_row) // 8) * 8)
    tile = min(_round_up(seq_len, 8), max_rows)
    if seq_len >= 16 and tile >= _round_up(seq_len, 8):
        # Whole table would fit in one tile: force >= 2 grid steps so both
        # v7x TensorCores get work on the "parallel" axis.
        tile = _round_up(pl.cdiv(seq_len, 2), 8)
    return max(8, (tile // 8) * 8)


@functools.lru_cache(maxsize=None)
def _pe_table(seq_len: int, d_model: int) -> jax.Array:
    """(seq_len, d_model) float32 sinusoidal table, generated once per shape."""
    mib = 1024 * 1024
    tile_s = _choose_tile_s(seq_len, d_model, _per_buffer_budget_bytes())
    n_tiles = pl.cdiv(seq_len, tile_s)

    # Host-precomputed per-column params (tiny (2, d_model)):
    #   row 0: inv_freq[j] = exp(-(2*(j//2)) * ln(1e4) / d_model)
    #   row 1: 1.0 for odd columns (cos), 0.0 for even columns (sin)
    half = np.arange(0, d_model, 2, dtype=np.float32)
    div_term = np.exp(half * -(math.log(10000.0) / float(d_model)))
    inv_freq = np.repeat(div_term, 2)[:d_model].astype(np.float32)
    odd = (np.arange(d_model) % 2).astype(np.float32)
    params = jnp.asarray(np.stack([inv_freq, odd], axis=0))   # (2, d_model)

    tile_bytes = tile_s * d_model * 4
    vmem_limit = max(6 * tile_bytes + 4 * mib, 16 * mib)

    return pl.pallas_call(
        functools.partial(_pe_kernel, tile_s=tile_s),
        out_shape=jax.ShapeDtypeStruct((seq_len, d_model), jnp.float32),
        grid=(n_tiles,),
        in_specs=[pl.BlockSpec((2, d_model), lambda i: (0, 0))],
        out_specs=pl.BlockSpec((tile_s, d_model), lambda i: (i, 0)),
        compiler_params=pltpu.CompilerParams(
            dimension_semantics=("parallel",),
            vmem_limit_bytes=int(vmem_limit)),
        cost_estimate=pl.CostEstimate(
            flops=3 * seq_len * d_model,
            transcendentals=2 * seq_len * d_model,
            bytes_accessed=seq_len * d_model * 4 + n_tiles * 2 * d_model * 4),
    )(params)


def positional_embedding(x: jax.Array, d_model: int,
                         max_len: int = 5000) -> jax.Array:
    """Equivalent of PositionalEmbedding(d_model, max_len).forward(x)."""
    # torch returns pe[:, :x.size(1)] of a (1, max_len, d) buffer.
    seq_len = min(int(x.shape[1]), int(max_len))
    return _pe_table(seq_len, int(d_model))[None, :, :]


def _reference_pe(seq_len: int, d_model: int) -> np.ndarray:
    pe = np.zeros((seq_len, d_model), dtype=np.float32)
    position = np.arange(0, seq_len, dtype=np.float32)[:, None]
    div_term = np.exp(
        np.arange(0, d_model, 2, dtype=np.float32) * -(math.log(10000.0) / d_model))
    pe[:, 0::2] = np.sin(position * div_term)
    pe[:, 1::2] = np.cos(position * div_term)
    return pe[None, :, :]


if __name__ == "__main__":
    key = jax.random.PRNGKey(0)
    batch, seq, d_model = 2, 8, 32
    # x only contributes its seq dimension to the forward pass.
    x = jax.random.normal(key, (batch, seq, d_model), dtype=jnp.float32)

    out = jax.block_until_ready(positional_embedding(x, d_model))
    ref = _reference_pe(seq, d_model)
    assert out.shape == (1, seq, d_model), out.shape
    assert out.dtype == jnp.float32
    np.testing.assert_allclose(np.asarray(out), ref, rtol=1e-5, atol=1e-5)

    # Second call with a different batch hits the lru_cache (no kernel rerun).
    x_b = jnp.zeros((4, seq, d_model), dtype=jnp.float32)
    out_b = jax.block_until_ready(positional_embedding(x_b, d_model))
    np.testing.assert_allclose(np.asarray(out_b), ref, rtol=1e-5, atol=1e-5)

    # Larger, non-multiple-of-8 seq with lane-dense d_model: exercises the
    # multi-tile "parallel" grid and the clipped last tile.
    seq2, d2 = 300, 256
    x2 = jnp.zeros((1, seq2, d2), dtype=jnp.float32)
    out2 = jax.block_until_ready(positional_embedding(x2, d2))
    np.testing.assert_allclose(np.asarray(out2), _reference_pe(seq2, d2),
                               rtol=1e-5, atol=1e-4)

    print("KERNEL_OK")
</pallas_src>

<mosaic_0001>
module attributes {stable_mosaic.version = 11 : i64} {
  func.func @_pe_kernel(%arg0: i32, %arg1: memref<2x32xf32, #tpu.memory_space<vmem>>, %arg2: memref<8x32xf32, #tpu.memory_space<vmem>>) attributes {dimension_semantics = [#tpu.dimension_semantics<parallel>], iteration_bounds = array<i64: 1>, scalar_prefetch = 0 : i64, scratch_operands = 0 : i64, tpu.core_type = #tpu.core_type<tc>, window_params = [{pipeline_mode = #tpu.pipeline_mode<synchronous>, transform_indices = @transform_0, window_bounds = array<i64: 2, 32>}, {transform_indices = @transform_1, window_bounds = array<i64: 8, 32>}]} {
    %c0 = arith.constant 0 : index
    %c0_0 = arith.constant 0 : index
    %0 = vector.load %arg1[%c0, %c0_0] : memref<2x32xf32, #tpu.memory_space<vmem>>, vector<2x32xf32>
    %1 = vector.extract_strided_slice %0 {offsets = [0, 0], sizes = [1, 32], strides = [1, 1]} : vector<2x32xf32> to vector<1x32xf32>
    %2 = vector.extract_strided_slice %0 {offsets = [1, 0], sizes = [1, 32], strides = [1, 1]} : vector<2x32xf32> to vector<1x32xf32>
    %3 = tpu.iota {dimensions = array<i32: 0>} : vector<8x1xi32>
    %c8_i32 = arith.constant 8 : i32
    %4 = arith.muli %arg0, %c8_i32 : i32
    %5 = vector.broadcast %4 : i32 to vector<8x1xi32>
    %6 = arith.addi %3, %5 : vector<8x1xi32>
    %7 = arith.sitofp %6 : vector<8x1xi32> to vector<8x1xf32>
    %8 = vector.broadcast %7 : vector<8x1xf32> to vector<8x32xf32>
    %9 = vector.broadcast %1 : vector<1x32xf32> to vector<8x32xf32>
    %10 = arith.mulf %8, %9 : vector<8x32xf32>
    %11 = math.sin %10 : vector<8x32xf32>
    %12 = math.cos %10 : vector<8x32xf32>
    %cst = arith.constant 5.000000e-01 : f32
    %13 = vector.broadcast %cst : f32 to vector<1x32xf32>
    %14 = arith.cmpf ogt, %2, %13 : vector<1x32xf32>
    %15 = vector.shape_cast %14 : vector<1x32xi1> to vector<1x32xi1>
    %16 = vector.broadcast %15 : vector<1x32xi1> to vector<8x32xi1>
    %17 = arith.select %16, %12, %11 : vector<8x32xi1>, vector<8x32xf32>
    %c0_1 = arith.constant 0 : index
    %c0_2 = arith.constant 0 : index
    %18 = vector.load %arg2[%c0_1, %c0_2] : memref<8x32xf32, #tpu.memory_space<vmem>>, vector<8x32xf32>
    tpu.vector_store %arg2[%c0_1, %c0_2], %17 {strides = array<i32>} : memref<8x32xf32, #tpu.memory_space<vmem>>, vector<8x32xf32>,
    return
  }
  func.func @transform_0(%arg0: i32) -> (i32, i32) {
    %c0_i32 = arith.constant 0 : i32
    %c0_i32_0 = arith.constant 0 : i32
    %c0_i32_1 = arith.constant 0 : i32
    return %c0_i32, %c0_i32_0 : i32, i32
  }
  func.func @transform_1(%arg0: i32) -> (i32, i32) {
    %c0_i32 = arith.constant 0 : i32
    %c0_i32_0 = arith.constant 0 : i32
    return %arg0, %c0_i32 : i32, i32
  }
}

</mosaic_0001>

<llo_original>
// kernel: tpu_custom_call.1
$region0: #{tpu_custom_call.1}
  #allocation0 [shape = 'u32[]', space=smem, size = 0x4, offset = 0x4, fixed_abs, tag = 'smem constant byte address 0x4 - core index']
  #allocation1 [shape = 'u32[144,128]{1,0:T(1,128)}', space=vmem, size = 0x12000, scoped, tag = 'internal scratch']
  %s0 = inlined_call_operand.hbm [shape: f32[2,32], index: 0, kind: input, shape index: {}]
  %s1 = inlined_call_operand.hbm [shape: f32[8,32], index: 1, kind: output, shape index: {}]
  %s2 = sld [smem:[#allocation0]]
  $region18: #{tpu_custom_call.1} parent=0
    _
  %s4 = ssub.s32 1, %s2
  %s5 = scalar_select 0, %s4, %s2
  $region1: #{tpu_custom_call.1} parent=0
    #allocation2 [shape = 'u8[1024]{0}', space=vmem, size = 0x400, scoped, tag = 'input window, operand 0, single buffered']
    #allocation3 [shape = 's32[1]{0}', space=sflag, size = 0x4, scoped, tag = 'scoped memory for tpu_custom_call.1']
    #allocation4 [shape = 's32[1]{0}', space=sflag, size = 0x4, scoped, tag = 'scoped memory for tpu_custom_call.1']
    #allocation5 [shape = 'u8[4096]{0}', space=vmem, size = 0x1000, scoped, tag = 'output window, operand 0, single buffered']
    %6 = vsyncpa [#allocation3], 0
    %7 = vsyncpa [#allocation4], 0
    // Predicated region
    $region2: #{tpu_custom_call.1} parent=1 // pred_check
      _
    $region3: #{tpu_custom_call.1} parent=1 // pred_check_branch
      %9 = sbr.rel (0) target = $region5
    $region4: #{tpu_custom_call.1} parent=1 // pred_region
      %s11 = ssub.s32 32, 32
      %12 = vsyncadd [#allocation3], %s11
      %s14 = sshll.u32 [#allocation2], 4
      %s15 = int_to_ptr.vmem [resolvable:$true] %s14
      %17 = dma.hbm_to_vmem [thread:$0]  %s0, 32, %s15, [#allocation3]
    $region5: #{tpu_custom_call.1} parent=1 // pred_fallthru
      _
    // Predicated region
    $region6: #{tpu_custom_call.1} parent=1 // pred_check
      _
    $region7: #{tpu_custom_call.1} parent=1 // pred_check_branch
      %19 = sbr.rel (0) target = $region9
    $region8: #{tpu_custom_call.1} parent=1 // pred_region
      %20 = dma.done [#allocation3], 32
    $region9: #{tpu_custom_call.1} parent=1 // pred_fallthru
      _
    %v21 = vld [vmem:[#allocation2] sm:$0x3]
    %v22 = vlaneseq
    %v23 = vshrl.u32 %v22, 7
    %s24 = smul.u32 0, 8
    %v25 = vstv %s24
    %v26 = vadd.s32 %v23, %v25
    %v27 = vcvt.s32.f32 %v26
    %v28 = vlaneseq
    %v29 = vshrl.u32 %v28, 7
    %v30 = vsub.s32 0, %v29
    %v31 = vrot.slane %v21, %v30
    %v32 = vmul.f32 %v27, %v31
    %v33 = vand.u32 2147483647, %v32
    %vm34 = vcmp.le.f32.partialorder %v33, 0.7853982
    %vm35 = vcmp.lt.s32.totalorder %v32, 0
    %v36 = vand.u32 %v32, 2139095040
    %v37 = vshrl.u32 %v36, 23
    %v38 = vsub.s32 %v37, 127
    %v39 = vand.u32 2147483647, %v32
    %v40 = vand.u32 %v39, 8388607
    %v41 = vor.u32 %v40, 8388608
    %v42 = vsub.s32 0, %v41
    %v43 = vadd.s32 %v38, 1
    %vm44 = vcmp.gt.s32.totalorder %v43, 0
    %v45 = vsel %vm44, %v43, 0
    %v46 = vshrl.u32 %v45, 5
    %v47 = vand.u32 %v45, 31
    %v48 = vsub.s32 32, %v47
    %v49 = vshrl.u32 683565275, %v48
    %v50 = vshll.u32 683565275, %v47
    %v51 = vshrl.u32 2475754826, %v48
    %v52 = vor.u32 %v50, %v51
    %v53 = vshll.u32 2475754826, %v47
    %v54 = vshrl.u32 2131351028, %v48
    %v55 = vor.u32 %v53, %v54
    %v56 = vshll.u32 2131351028, %v47
    %v57 = vshrl.u32 2102212464, %v48
    %v58 = vor.u32 %v56, %v57
    %v59 = vshll.u32 2102212464, %v47
    %v60 = vshrl.u32 920167782, %v48
    %v61 = vor.u32 %v59, %v60
    %v62 = vshll.u32 920167782, %v47
    %v63 = vshrl.u32 1326507024, %v48
    %v64 = vor.u32 %v62, %v63
    %vm65 = vcmp.lt.s32.totalorder %v46, 1
    %vm66 = vcmp.lt.s32.totalorder %v46, 2
    %vm67 = vcmp.lt.s32.totalorder %v46, 3
    %vm68 = vcmp.lt.s32.totalorder %v46, 4
    %v69 = vsel %vm65, %v49, %v52
    %v70 = vsel %vm68, %v58, 2102212464
    %v71 = vsel %vm67, %v55, %v70
    %v72 = vsel %vm66, %v69, %v71
    %v73 = vsel %vm65, %v52, %v55
    %v74 = vsel %vm68, %v61, 920167782
    %v75 = vsel %vm67, %v58, %v74
    %v76 = vsel %vm66, %v73, %v75
    %v77 = vsel %vm65, %v55, %v58
    %v78 = vsel %vm68, %v64, 1326507024
    %v79 = vsel %vm67, %v61, %v78
    %v80 = vsel %vm66, %v77, %v79
    %v81 = vshll.u32 %v41, 8
    %v82 = vmul.u32.u64.compose %v81, %v80
    %v83 = vextract.low.u32 %v82
    %v84 = vextract.high.u32 %v82
    %v85 = vmul.u32.u64.compose %v81, %v76
    %v86 = vextract.low.u32 %v85
    %v87 = vextract.high.u32 %v85
    %v88 = vmul.u32 %v81, %v72
    %v89 = vadd.s32 %v84, %v86
    %vm90 = vc.u32 %v84, %v86
    %v91 = vadd.s32 %v87, 1
    %v92 = vsel %vm90, %v91, %v87
    %v93 = vadd.s32 %v88, %v92
    %v94 = vadd.s32 %v93, 536870912
    %v95 = vshrl.u32 %v94, 30
    %v96 = vshll.u32 %v95, 30
    %v97 = vsub.s32 %v93, %v96
    %vm98 = vcmp.lt.s32.totalorder %v97, 0
    %v99 = vsub.s32 0, %v97
    %v100 = vsel %vm98, %v99, %v97
    %v101 = vclz %v100
    %v102 = vsub.s32 %v101, 2
    %vm103 = vcmp.gt.s32.totalorder 0, %v102
    %v104 = vsel %vm103, 0, %v102
    %v105 = vsub.s32 32, %v104
    %v106 = vshll.u32 %v97, %v104
    %v107 = vshrl.u32 %v89, %v105
    %v108 = vor.u32 %v106, %v107
    %v109 = vsub.s32 4294967266, %v104
    %v110 = vadd.s32 %v109, 127
    %v111 = vshll.u32 %v110, 23
    %v112 = vor.u32 4788187, %v111
    %v113 = vand.u32 2147483647, %v112
    %v115 = vcvt.s32.f32 %v108
    %v116 = vmul.f32 %v115, %v113
    %v117 = vxor.u32 %v116, 2147483648
    %v118 = vsel %vm35, %v117, %v116
    %v119 = vsub.s32 4, %v95
    %v120 = vsel %vm35, %v119, %v95
    %v121 = vsel %vm34, %v32, %v118
    %v122 = vsel %vm34, 0, %v120
    %v123 = vcosq.f32.pop %v121
    %v124 = vsinq.f32.pop %v121
    %vm125 = vweird.f32 %v32
    %v126 = vadd.s32 %v122, 3
    %v127 = vand.u32 %v126, 3
    %vm128 = vcmp.lt.s32.totalorder %v127, 2
    %vm129 = vcmp.eq.s32.totalorder %v127, 0
    %v130 = vxor.u32 %v124, 2147483648
    %v131 = vsel %vm129, %v123, %v130
    %vm132 = vcmp.eq.s32.totalorder %v127, 2
    %v133 = vxor.u32 %v123, 2147483648
    %v134 = vsel %vm132, %v133, %v124
    %v135 = vsel %vm128, %v131, %v134
    %v136 = vsel %vm125, nan, %v135
    %v137 = vand.u32 2147483647, %v32
    %vm138 = vcmp.le.f32.partialorder %v137, 0.7853982
    %vm139 = vcmp.lt.s32.totalorder %v32, 0
    %v140 = vand.u32 %v32, 2139095040
    %v141 = vshrl.u32 %v140, 23
    %v142 = vsub.s32 %v141, 127
    %v143 = vand.u32 2147483647, %v32
    %v144 = vand.u32 %v143, 8388607
    %v145 = vor.u32 %v144, 8388608
    %v146 = vsub.s32 0, %v145
    %v147 = vadd.s32 %v142, 1
    %vm148 = vcmp.gt.s32.totalorder %v147, 0
    %v149 = vsel %vm148, %v147, 0
    %v150 = vshrl.u32 %v149, 5
    %v151 = vand.u32 %v149, 31
    %v152 = vsub.s32 32, %v151
    %v153 = vshrl.u32 683565275, %v152
    %v154 = vshll.u32 683565275, %v151
    %v155 = vshrl.u32 2475754826, %v152
    %v156 = vor.u32 %v154, %v155
    %v157 = vshll.u32 2475754826, %v151
    %v158 = vshrl.u32 2131351028, %v152
    %v159 = vor.u32 %v157, %v158
    %v160 = vshll.u32 2131351028, %v151
    %v161 = vshrl.u32 2102212464, %v152
    %v162 = vor.u32 %v160, %v161
    %v163 = vshll.u32 2102212464, %v151
    %v164 = vshrl.u32 920167782, %v152
    %v165 = vor.u32 %v163, %v164
    %v166 = vshll.u32 920167782, %v151
    %v167 = vshrl.u32 1326507024, %v152
    %v168 = vor.u32 %v166, %v167
    %vm169 = vcmp.lt.s32.totalorder %v150, 1
    %vm170 = vcmp.lt.s32.totalorder %v150, 2
    %vm171 = vcmp.lt.s32.totalorder %v150, 3
    %vm172 = vcmp.lt.s32.totalorder %v150, 4
    %v173 = vsel %vm169, %v153, %v156
    %v174 = vsel %vm172, %v162, 2102212464
    %v175 = vsel %vm171, %v159, %v174
    %v176 = vsel %vm170, %v173, %v175
    %v177 = vsel %vm169, %v156, %v159
    %v178 = vsel %vm172, %v165, 920167782
    %v179 = vsel %vm171, %v162, %v178
    %v180 = vsel %vm170, %v177, %v179
    %v181 = vsel %vm169, %v159, %v162
    %v182 = vsel %vm172, %v168, 1326507024
    %v183 = vsel %vm171, %v165, %v182
    %v184 = vsel %vm170, %v181, %v183
    %v185 = vshll.u32 %v145, 8
    %v186 = vmul.u32.u64.compose %v185, %v184
    %v187 = vextract.low.u32 %v186
    %v188 = vextract.high.u32 %v186
    %v189 = vmul.u32.u64.compose %v185, %v180
    %v190 = vextract.low.u32 %v189
    %v191 = vextract.high.u32 %v189
    %v192 = vmul.u32 %v185, %v176
    %v193 = vadd.s32 %v188, %v190
    %vm194 = vc.u32 %v188, %v190
    %v195 = vadd.s32 %v191, 1
    %v196 = vsel %vm194, %v195, %v191
    %v197 = vadd.s32 %v192, %v196
    %v198 = vadd.s32 %v197, 536870912
    %v199 = vshrl.u32 %v198, 30
    %v200 = vshll.u32 %v199, 30
    %v201 = vsub.s32 %v197, %v200
    %vm202 = vcmp.lt.s32.totalorder %v201, 0
    %v203 = vsub.s32 0, %v201
    %v204 = vsel %vm202, %v203, %v201
    %v205 = vclz %v204
    %v206 = vsub.s32 %v205, 2
    %vm207 = vcmp.gt.s32.totalorder 0, %v206
    %v208 = vsel %vm207, 0, %v206
    %v209 = vsub.s32 32, %v208
    %v210 = vshll.u32 %v201, %v208
    %v211 = vshrl.u32 %v193, %v209
    %v212 = vor.u32 %v210, %v211
    %v213 = vsub.s32 4294967266, %v208
    %v214 = vadd.s32 %v213, 127
    %v215 = vshll.u32 %v214, 23
    %v216 = vor.u32 4788187, %v215
    %v217 = vand.u32 2147483647, %v216
    %v219 = vcvt.s32.f32 %v212
    %v220 = vmul.f32 %v219, %v217
    %v221 = vxor.u32 %v220, 2147483648
    %v222 = vsel %vm139, %v221, %v220
    %v223 = vsub.s32 4, %v199
    %v224 = vsel %vm139, %v223, %v199
    %v225 = vsel %vm138, %v32, %v222
    %v226 = vsel %vm138, 0, %v224
    %v227 = vcosq.f32.pop %v225
    %v228 = vsinq.f32.pop %v225
    %vm229 = vweird.f32 %v32
    %v230 = vand.u32 %v226, 3
    %vm231 = vcmp.lt.s32.totalorder %v230, 2
    %vm232 = vcmp.eq.s32.totalorder %v230, 0
    %v233 = vxor.u32 %v228, 2147483648
    %v234 = vsel %vm232, %v227, %v233
    %vm235 = vcmp.eq.s32.totalorder %v230, 2
    %v236 = vxor.u32 %v227, 2147483648
    %v237 = vsel %vm235, %v236, %v228
    %v238 = vsel %vm231, %v234, %v237
    %v239 = vsel %vm229, nan, %v238
    %vm240 = vcmp.gt.f32.partialorder %v21, 0.5
    %v241 = vsel %vm240, 1, 0
    %v242 = vlaneseq
    %v243 = vshrl.u32 %v242, 7
    %v244 = vsub.s32 1, %v243
    %v245 = vrot.slane %v241, %v244
    %vm246 = vcmp.eq.s32.totalorder %v245, 1
    %v247 = vsel %vm246, %v239, %v136
    %vm248 = vcmask 261120
    %249 = vst.msk [vmem:[#allocation5] sm:$0xff] %vm248, %v247
    // Predicated region
    $region10: #{tpu_custom_call.1} parent=1 // pred_check
      _
    $region11: #{tpu_custom_call.1} parent=1 // pred_check_branch
      %251 = sbr.rel (0) target = $region13
    $region12: #{tpu_custom_call.1} parent=1 // pred_region
      %s253 = ssub.s32 128, 128
      %254 = vsyncadd [#allocation4], %s253
      %s256 = sshll.u32 [#allocation5], 4
      %s257 = int_to_ptr.vmem [resolvable:$true] %s256
      %259 = dma.vmem_to_hbm [thread:$0]  %s257, 128, %s1, [#allocation4]
    $region13: #{tpu_custom_call.1} parent=1 // pred_fallthru
      _
    // Predicated region
    $region14: #{tpu_custom_call.1} parent=1 // pred_check
      _
    $region15: #{tpu_custom_call.1} parent=1 // pred_check_branch
      %261 = sbr.rel (0) target = $region17
    $region16: #{tpu_custom_call.1} parent=1 // pred_region
      %262 = dma.done [#allocation4], 128
    $region17: #{tpu_custom_call.1} parent=1 // pred_fallthru
      _
    %263 = vsyncpa [#allocation3], 1
    %264 = vsyncpa [#allocation4], 1

</llo_original>
